<compile_context>
chip_gen: v7x
topology: tpu7x:2x2x1
jax: 0.10.0
libtpu: 0.0.40
codegen_flags: <defaults>
</compile_context>

<pallas_src>
import jax
import jax.numpy as jnp
from jax.experimental import pallas as pl
from jax.experimental.pallas import tpu as pltpu

HEIGHT = 26
WIDTH = 26
NUM_CLASSES = 5
IN_DIM = HEIGHT * WIDTH   # 676
H1 = 300
H2 = 100
OUT_PAD = 128             # lane-dense padded output width
DROP_P = 0.5              # F.dropout default


def _mlp_kernel(x_ref, mask_ref, w1_ref, b1_ref, w2_ref, b2_ref,
                w3_ref, b3_ref, o_ref):
    # Activations stay f32 for the elementwise (VPU) path; only MXU operands
    # are bf16, accumulation is f32.
    x = x_ref[...].astype(jnp.bfloat16)

    # ---- linear1 + relu ----
    h1 = jnp.dot(x, w1_ref[...], preferred_element_type=jnp.float32) + b1_ref[...]
    h1 = jnp.maximum(h1, 0.0)

    # ---- dropout(p=0.5, training=True) ----
    # keep-mask is {0,1} f32; the 1/(1-p)=2 rescale is folded into W2.
    h1 = h1 * mask_ref[...]

    # ---- linear2 + relu ----
    h2 = jnp.dot(h1.astype(jnp.bfloat16), w2_ref[...],
                 preferred_element_type=jnp.float32) + b2_ref[...]
    h2 = jnp.maximum(h2, 0.0)

    # ---- linear3 + relu (lane-dense, zero-padded to 128 outputs) ----
    y = jnp.dot(h2.astype(jnp.bfloat16), w3_ref[...],
                preferred_element_type=jnp.float32) + b3_ref[...]
    y = jnp.maximum(y, 0.0)

    o_ref[...] = y.astype(o_ref.dtype)


def feed_forward_nn(x, prepared_params, dropout_key, *, tile_b=256):
    """x: f32[B, 676] -> f32[B, 5]. `prepared_params` from prepare_params()."""
    w1, b1, w2, b2, w3, b3 = prepared_params
    B = x.shape[0]

    # Batch tile: multiple of 8 sublanes, capped; weights stay VMEM-resident
    # across the whole grid (constant index_map).
    tb = min(tile_b, max(8, ((B + 7) // 8) * 8))
    n_tiles = pl.cdiv(B, tb)
    Bp = n_tiles * tb
    if Bp != B:
        x = jnp.pad(x, ((0, Bp - B), (0, 0)))

    # Dropout keep-mask drawn on host/XLA side (in-kernel PRNG not portable to
    # the interpret path); applied inside the kernel.
    keep = jax.random.bernoulli(dropout_key, 1.0 - DROP_P, (Bp, H1))
    mask = keep.astype(jnp.float32)

    const2d = lambda shape: pl.BlockSpec(shape, lambda i: (0, 0))

    out = pl.pallas_call(
        _mlp_kernel,
        out_shape=jax.ShapeDtypeStruct((Bp, OUT_PAD), jnp.float32),
        grid=(n_tiles,),
        in_specs=[
            pl.BlockSpec((tb, IN_DIM), lambda i: (i, 0)),   # x
            pl.BlockSpec((tb, H1), lambda i: (i, 0)),       # dropout keep-mask
            const2d(w1.shape),                              # W1 [676, 300] bf16
            const2d(b1.shape),                              # b1 [1, 300]  f32
            const2d(w2.shape),                              # 2*W2 [300, 100] bf16
            const2d(b2.shape),                              # b2 [1, 100]  f32
            const2d(w3.shape),                              # W3 [100, 128] bf16
            const2d(b3.shape),                              # b3 [1, 128]  f32
        ],
        out_specs=pl.BlockSpec((tb, OUT_PAD), lambda i: (i, 0)),
        compiler_params=pltpu.CompilerParams(
            dimension_semantics=("parallel",)),
    )(x, mask, w1, b1, w2, b2, w3, b3)

    return out[:B, :NUM_CLASSES]


def init_params(key):
    """torch.nn.Linear default init (U[-1/sqrt(fan_in), +1/sqrt(fan_in)]),
    weights stored transposed [in_features, out_features], f32."""
    ks = jax.random.split(key, 6)

    def lin(kw, kb, fan_in, fan_out):
        bound = 1.0 / float(fan_in) ** 0.5
        w = jax.random.uniform(kw, (fan_in, fan_out), jnp.float32, -bound, bound)
        b = jax.random.uniform(kb, (1, fan_out), jnp.float32, -bound, bound)
        return w, b

    w1, b1 = lin(ks[0], ks[1], IN_DIM, H1)
    w2, b2 = lin(ks[2], ks[3], H1, H2)
    w3, b3 = lin(ks[4], ks[5], H2, NUM_CLASSES)
    return (w1, b1, w2, b2, w3, b3)


def prepare_params(params):
    """One-time conversion to the kernel layout:
      * weights -> bf16 (halves the weight HBM traffic that dominates),
      * dropout 1/(1-p) rescale folded into W2,
      * final layer zero-padded to a lane-dense 128-wide output."""
    w1, b1, w2, b2, w3, b3 = params
    w2_scaled = w2 * (1.0 / (1.0 - DROP_P))
    w3_pad = jnp.zeros((H2, OUT_PAD), jnp.float32).at[:, :NUM_CLASSES].set(w3)
    b3_pad = jnp.zeros((1, OUT_PAD), jnp.float32).at[:, :NUM_CLASSES].set(b3)
    return (w1.astype(jnp.bfloat16), b1,
            w2_scaled.astype(jnp.bfloat16), b2,
            w3_pad.astype(jnp.bfloat16), b3_pad)


if __name__ == "__main__":
    key = jax.random.PRNGKey(0)
    kx, kp, kd = jax.random.split(key, 3)

    B = 8
    x = jax.random.normal(kx, (B, IN_DIM), dtype=jnp.float32)
    params = prepare_params(init_params(kp))

    y = feed_forward_nn(x, params, dropout_key=kd)
    y = jax.block_until_ready(y)

    assert y.shape == (B, NUM_CLASSES), y.shape
    assert bool(jnp.all(y >= 0.0))          # relu output is non-negative
    print("KERNEL_OK")
</pallas_src>

<mosaic_0001>
module attributes {stable_mosaic.version = 11 : i64} {
  func.func @_mlp_kernel(%arg0: i32, %arg1: memref<8x676xf32, #tpu.memory_space<vmem>>, %arg2: memref<8x300xf32, #tpu.memory_space<vmem>>, %arg3: memref<676x300xbf16, #tpu.memory_space<vmem>>, %arg4: memref<1x300xf32, #tpu.memory_space<vmem>>, %arg5: memref<300x100xbf16, #tpu.memory_space<vmem>>, %arg6: memref<1x100xf32, #tpu.memory_space<vmem>>, %arg7: memref<100x128xbf16, #tpu.memory_space<vmem>>, %arg8: memref<1x128xf32, #tpu.memory_space<vmem>>, %arg9: memref<8x128xf32, #tpu.memory_space<vmem>>) attributes {dimension_semantics = [#tpu.dimension_semantics<parallel>], iteration_bounds = array<i64: 1>, scalar_prefetch = 0 : i64, scratch_operands = 0 : i64, tpu.core_type = #tpu.core_type<tc>, window_params = [{transform_indices = @transform_0, window_bounds = array<i64: 8, 676>}, {transform_indices = @transform_1, window_bounds = array<i64: 8, 300>}, {pipeline_mode = #tpu.pipeline_mode<synchronous>, transform_indices = @transform_2, window_bounds = array<i64: 676, 300>}, {pipeline_mode = #tpu.pipeline_mode<synchronous>, transform_indices = @transform_3, window_bounds = array<i64: 1, 300>}, {pipeline_mode = #tpu.pipeline_mode<synchronous>, transform_indices = @transform_4, window_bounds = array<i64: 300, 100>}, {pipeline_mode = #tpu.pipeline_mode<synchronous>, transform_indices = @transform_5, window_bounds = array<i64: 1, 100>}, {pipeline_mode = #tpu.pipeline_mode<synchronous>, transform_indices = @transform_6, window_bounds = array<i64: 100, 128>}, {pipeline_mode = #tpu.pipeline_mode<synchronous>, transform_indices = @transform_7, window_bounds = array<i64: 1, 128>}, {transform_indices = @transform_8, window_bounds = array<i64: 8, 128>}]} {
    %c0 = arith.constant 0 : index
    %c0_0 = arith.constant 0 : index
    %0 = vector.load %arg1[%c0, %c0_0] : memref<8x676xf32, #tpu.memory_space<vmem>>, vector<8x676xf32>
    %1 = arith.truncf %0 : vector<8x676xf32> to vector<8x676xbf16>
    %c0_1 = arith.constant 0 : index
    %c0_2 = arith.constant 0 : index
    %2 = vector.load %arg3[%c0_1, %c0_2] : memref<676x300xbf16, #tpu.memory_space<vmem>>, vector<676x300xbf16>
    %cst = arith.constant dense<0.000000e+00> : vector<8x300xf32>
    %3 = tpu.matmul %1, %2, %cst {dimension_numbers = #tpu.dot_dimension_numbers<[1], [0], [0], [1], [0, 0, 1, 1], [], []>} : vector<8x676xbf16>, vector<676x300xbf16>, vector<8x300xf32> -> vector<8x300xf32>
    %c0_3 = arith.constant 0 : index
    %c0_4 = arith.constant 0 : index
    %4 = vector.load %arg4[%c0_3, %c0_4] : memref<1x300xf32, #tpu.memory_space<vmem>>, vector<1x300xf32>
    %5 = vector.broadcast %4 : vector<1x300xf32> to vector<8x300xf32>
    %6 = arith.addf %3, %5 : vector<8x300xf32>
    %cst_5 = arith.constant 0.000000e+00 : f32
    %7 = vector.broadcast %cst_5 : f32 to vector<8x300xf32>
    %8 = arith.maximumf %6, %7 : vector<8x300xf32>
    %c0_6 = arith.constant 0 : index
    %c0_7 = arith.constant 0 : index
    %9 = vector.load %arg2[%c0_6, %c0_7] : memref<8x300xf32, #tpu.memory_space<vmem>>, vector<8x300xf32>
    %10 = arith.mulf %8, %9 : vector<8x300xf32>
    %11 = arith.truncf %10 : vector<8x300xf32> to vector<8x300xbf16>
    %c0_8 = arith.constant 0 : index
    %c0_9 = arith.constant 0 : index
    %12 = vector.load %arg5[%c0_8, %c0_9] : memref<300x100xbf16, #tpu.memory_space<vmem>>, vector<300x100xbf16>
    %cst_10 = arith.constant dense<0.000000e+00> : vector<8x100xf32>
    %13 = tpu.matmul %11, %12, %cst_10 {dimension_numbers = #tpu.dot_dimension_numbers<[1], [0], [0], [1], [0, 0, 1, 1], [], []>} : vector<8x300xbf16>, vector<300x100xbf16>, vector<8x100xf32> -> vector<8x100xf32>
    %c0_11 = arith.constant 0 : index
    %c0_12 = arith.constant 0 : index
    %14 = vector.load %arg6[%c0_11, %c0_12] : memref<1x100xf32, #tpu.memory_space<vmem>>, vector<1x100xf32>
    %15 = vector.broadcast %14 : vector<1x100xf32> to vector<8x100xf32>
    %16 = arith.addf %13, %15 : vector<8x100xf32>
    %cst_13 = arith.constant 0.000000e+00 : f32
    %17 = vector.broadcast %cst_13 : f32 to vector<8x100xf32>
    %18 = arith.maximumf %16, %17 : vector<8x100xf32>
    %19 = arith.truncf %18 : vector<8x100xf32> to vector<8x100xbf16>
    %c0_14 = arith.constant 0 : index
    %c0_15 = arith.constant 0 : index
    %20 = vector.load %arg7[%c0_14, %c0_15] : memref<100x128xbf16, #tpu.memory_space<vmem>>, vector<100x128xbf16>
    %cst_16 = arith.constant dense<0.000000e+00> : vector<8x128xf32>
    %21 = tpu.matmul %19, %20, %cst_16 {dimension_numbers = #tpu.dot_dimension_numbers<[1], [0], [0], [1], [0, 0, 1, 1], [], []>} : vector<8x100xbf16>, vector<100x128xbf16>, vector<8x128xf32> -> vector<8x128xf32>
    %c0_17 = arith.constant 0 : index
    %c0_18 = arith.constant 0 : index
    %22 = vector.load %arg8[%c0_17, %c0_18] : memref<1x128xf32, #tpu.memory_space<vmem>>, vector<1x128xf32>
    %23 = vector.broadcast %22 : vector<1x128xf32> to vector<8x128xf32>
    %24 = arith.addf %21, %23 : vector<8x128xf32>
    %cst_19 = arith.constant 0.000000e+00 : f32
    %25 = vector.broadcast %cst_19 : f32 to vector<8x128xf32>
    %26 = arith.maximumf %24, %25 : vector<8x128xf32>
    %c0_20 = arith.constant 0 : index
    %c0_21 = arith.constant 0 : index
    %27 = vector.load %arg9[%c0_20, %c0_21] : memref<8x128xf32, #tpu.memory_space<vmem>>, vector<8x128xf32>
    tpu.vector_store %arg9[%c0_20, %c0_21], %26 {strides = array<i32>} : memref<8x128xf32, #tpu.memory_space<vmem>>, vector<8x128xf32>,
    return
  }
  func.func @transform_0(%arg0: i32) -> (i32, i32) {
    %c0_i32 = arith.constant 0 : i32
    %c0_i32_0 = arith.constant 0 : i32
    return %arg0, %c0_i32 : i32, i32
  }
  func.func @transform_1(%arg0: i32) -> (i32, i32) {
    %c0_i32 = arith.constant 0 : i32
    %c0_i32_0 = arith.constant 0 : i32
    return %arg0, %c0_i32 : i32, i32
  }
  func.func @transform_2(%arg0: i32) -> (i32, i32) {
    %c0_i32 = arith.constant 0 : i32
    %c0_i32_0 = arith.constant 0 : i32
    %c0_i32_1 = arith.constant 0 : i32
    return %c0_i32, %c0_i32_0 : i32, i32
  }
  func.func @transform_3(%arg0: i32) -> (i32, i32) {
    %c0_i32 = arith.constant 0 : i32
    %c0_i32_0 = arith.constant 0 : i32
    %c0_i32_1 = arith.constant 0 : i32
    return %c0_i32, %c0_i32_0 : i32, i32
  }
  func.func @transform_4(%arg0: i32) -> (i32, i32) {
    %c0_i32 = arith.constant 0 : i32
    %c0_i32_0 = arith.constant 0 : i32
    %c0_i32_1 = arith.constant 0 : i32
    return %c0_i32, %c0_i32_0 : i32, i32
  }
  func.func @transform_5(%arg0: i32) -> (i32, i32) {
    %c0_i32 = arith.constant 0 : i32
    %c0_i32_0 = arith.constant 0 : i32
    %c0_i32_1 = arith.constant 0 : i32
    return %c0_i32, %c0_i32_0 : i32, i32
  }
  func.func @transform_6(%arg0: i32) -> (i32, i32) {
    %c0_i32 = arith.constant 0 : i32
    %c0_i32_0 = arith.constant 0 : i32
    %c0_i32_1 = arith.constant 0 : i32
    return %c0_i32, %c0_i32_0 : i32, i32
  }
  func.func @transform_7(%arg0: i32) -> (i32, i32) {
    %c0_i32 = arith.constant 0 : i32
    %c0_i32_0 = arith.constant 0 : i32
    %c0_i32_1 = arith.constant 0 : i32
    return %c0_i32, %c0_i32_0 : i32, i32
  }
  func.func @transform_8(%arg0: i32) -> (i32, i32) {
    %c0_i32 = arith.constant 0 : i32
    %c0_i32_0 = arith.constant 0 : i32
    return %arg0, %c0_i32 : i32, i32
  }
}

</mosaic_0001>

<llo_original>
// kernel: tpu_custom_call.1
$region0: #{tpu_custom_call.1}
  #allocation0 [shape = 'u32[]', space=smem, size = 0x4, offset = 0x4, fixed_abs, tag = 'smem constant byte address 0x4 - core index']
  #allocation1 [shape = 'u32[144,128]{1,0:T(1,128)}', space=vmem, size = 0x12000, scoped, tag = 'internal scratch']
  %s0 = inlined_call_operand.vmem [shape: f32[8,676], index: 0, kind: input, shape index: {}]
  %s1 = inlined_call_operand.vmem [shape: f32[8,300], index: 1, kind: input, shape index: {}]
  %s2 = inlined_call_operand.vmem [shape: bf16[676,300], index: 2, kind: input, shape index: {}]
  %s3 = inlined_call_operand.vmem [shape: f32[1,300], index: 3, kind: input, shape index: {}]
  %s4 = inlined_call_operand.vmem [shape: bf16[300,100], index: 4, kind: input, shape index: {}]
  %s5 = inlined_call_operand.vmem [shape: f32[1,100], index: 5, kind: input, shape index: {}]
  %s6 = inlined_call_operand.vmem [shape: bf16[100,128], index: 6, kind: input, shape index: {}]
  %s7 = inlined_call_operand.vmem [shape: f32[1,128], index: 7, kind: input, shape index: {}]
  %s8 = inlined_call_operand.hbm [shape: f32[8,128], index: 8, kind: output, shape index: {}]
  %s9 = sld [smem:[#allocation0]]
  $region42: #{tpu_custom_call.1} parent=0
    _
  %s11 = ssub.s32 1, %s9
  %s12 = scalar_select 0, %s11, %s9
  $region1: #{tpu_custom_call.1} parent=0
    #allocation2 [shape = 'u8[4096]{0}', space=vmem, size = 0x1000, scoped, tag = 'output window, operand 0, single buffered']
    #allocation3 [shape = 's32[1]{0}', space=sflag, size = 0x4, scoped, tag = 'scoped memory for tpu_custom_call.1']
    %13 = vsyncpa [#allocation3], 0
    // Predicated region
    $region2: #{tpu_custom_call.1} parent=1 // pred_check
      _
    $region3: #{tpu_custom_call.1} parent=1 // pred_check_branch
      %15 = sbr.rel (0) target = $region5
    $region4: #{tpu_custom_call.1} parent=1 // pred_region
      _
    $region5: #{tpu_custom_call.1} parent=1 // pred_fallthru
      _
    // Predicated region
    $region6: #{tpu_custom_call.1} parent=1 // pred_check
      _
    $region7: #{tpu_custom_call.1} parent=1 // pred_check_branch
      %17 = sbr.rel (0) target = $region9
    $region8: #{tpu_custom_call.1} parent=1 // pred_region
      _
    $region9: #{tpu_custom_call.1} parent=1 // pred_fallthru
      _
    // Predicated region
    $region10: #{tpu_custom_call.1} parent=1 // pred_check
      _
    $region11: #{tpu_custom_call.1} parent=1 // pred_check_branch
      %19 = sbr.rel (0) target = $region13
    $region12: #{tpu_custom_call.1} parent=1 // pred_region
      _
    $region13: #{tpu_custom_call.1} parent=1 // pred_fallthru
      _
    // Predicated region
    $region14: #{tpu_custom_call.1} parent=1 // pred_check
      _
    $region15: #{tpu_custom_call.1} parent=1 // pred_check_branch
      %21 = sbr.rel (0) target = $region17
    $region16: #{tpu_custom_call.1} parent=1 // pred_region
      _
    $region17: #{tpu_custom_call.1} parent=1 // pred_fallthru
      _
    // Predicated region
    $region18: #{tpu_custom_call.1} parent=1 // pred_check
      _
    $region19: #{tpu_custom_call.1} parent=1 // pred_check_branch
      %23 = sbr.rel (0) target = $region21
    $region20: #{tpu_custom_call.1} parent=1 // pred_region
      _
    $region21: #{tpu_custom_call.1} parent=1 // pred_fallthru
      _
    // Predicated region
    $region22: #{tpu_custom_call.1} parent=1 // pred_check
      _
    $region23: #{tpu_custom_call.1} parent=1 // pred_check_branch
      %25 = sbr.rel (0) target = $region25
    $region24: #{tpu_custom_call.1} parent=1 // pred_region
      _
    $region25: #{tpu_custom_call.1} parent=1 // pred_fallthru
      _
    // Predicated region
    $region26: #{tpu_custom_call.1} parent=1 // pred_check
      _
    $region27: #{tpu_custom_call.1} parent=1 // pred_check_branch
      %27 = sbr.rel (0) target = $region29
    $region28: #{tpu_custom_call.1} parent=1 // pred_region
      _
    $region29: #{tpu_custom_call.1} parent=1 // pred_fallthru
      _
    // Predicated region
    $region30: #{tpu_custom_call.1} parent=1 // pred_check
      _
    $region31: #{tpu_custom_call.1} parent=1 // pred_check_branch
      %29 = sbr.rel (0) target = $region33
    $region32: #{tpu_custom_call.1} parent=1 // pred_region
      _
    $region33: #{tpu_custom_call.1} parent=1 // pred_fallthru
      _
    %v31 = vld [vmem:[%s0] sm:$0xff]
    %v32 = vld [vmem:[%s0 + $0x8] sm:$0xff]
    %v33 = vld [vmem:[%s0 + $0x10] sm:$0xff]
    %v34 = vld [vmem:[%s0 + $0x18] sm:$0xff]
    %v35 = vld [vmem:[%s0 + $0x20] sm:$0xff]
    %v36 = vld [vmem:[%s0 + $0x28] sm:$0xff]
    %v37 = vpack.c.bf16 %v31, %v31
    %v38 = vpack.c.bf16 %v32, %v32
    %v39 = vpack.c.bf16 %v33, %v33
    %v40 = vpack.c.bf16 %v34, %v34
    %v41 = vpack.c.bf16 %v35, %v35
    %v42 = vpack.c.bf16 %v36, %v36
    %v43 = vld [vmem:[%s2] sm:$0xff]
    %v44 = vld [vmem:[%s2 + $0x8] sm:$0xf]
    %v45 = vld [vmem:[%s2 + $0xc] sm:$0xff]
    %v46 = vld [vmem:[%s2 + $0x14] sm:$0xf]
    %v47 = vld [vmem:[%s2 + $0x18] sm:$0xff]
    %v48 = vld [vmem:[%s2 + $0x20] sm:$0xf]
    %v49 = vld [vmem:[%s2 + $0x24] sm:$0xff]
    %v50 = vld [vmem:[%s2 + $0x2c] sm:$0xf]
    %v51 = vld [vmem:[%s2 + $0x30] sm:$0xff]
    %v52 = vld [vmem:[%s2 + $0x38] sm:$0xf]
    %v53 = vld [vmem:[%s2 + $0x3c] sm:$0xff]
    %v54 = vld [vmem:[%s2 + $0x44] sm:$0xf]
    %v55 = vld [vmem:[%s2 + $0x48] sm:$0xff]
    %v56 = vld [vmem:[%s2 + $0x50] sm:$0xf]
    %v57 = vld [vmem:[%s2 + $0x54] sm:$0xff]
    %v58 = vld [vmem:[%s2 + $0x5c] sm:$0xf]
    %v59 = vld [vmem:[%s2 + $0x60] sm:$0xff]
    %v60 = vld [vmem:[%s2 + $0x68] sm:$0xf]
    %v61 = vld [vmem:[%s2 + $0x6c] sm:$0xff]
    %v62 = vld [vmem:[%s2 + $0x74] sm:$0xf]
    %v63 = vld [vmem:[%s2 + $0x78] sm:$0xff]
    %v64 = vld [vmem:[%s2 + $0x80] sm:$0xf]
    %v65 = vld [vmem:[%s2 + $0x84] sm:$0xff]
    %v66 = vld [vmem:[%s2 + $0x8c] sm:$0xf]
    %v67 = vld [vmem:[%s2 + $0x90] sm:$0xff]
    %v68 = vld [vmem:[%s2 + $0x98] sm:$0xf]
    %v69 = vld [vmem:[%s2 + $0x9c] sm:$0xff]
    %v70 = vld [vmem:[%s2 + $0xa4] sm:$0xf]
    %v71 = vld [vmem:[%s2 + $0xa8] sm:$0xff]
    %v72 = vld [vmem:[%s2 + $0xb0] sm:$0xf]
    %v73 = vld [vmem:[%s2 + $0xb4] sm:$0xff]
    %v74 = vld [vmem:[%s2 + $0xbc] sm:$0xf]
    %v75 = vld [vmem:[%s2 + $0xc0] sm:$0xff]
    %v76 = vld [vmem:[%s2 + $0xc8] sm:$0xf]
    %v77 = vld [vmem:[%s2 + $0xcc] sm:$0xff]
    %v78 = vld [vmem:[%s2 + $0xd4] sm:$0xf]
    %v79 = vld [vmem:[%s2 + $0xd8] sm:$0xff]
    %v80 = vld [vmem:[%s2 + $0xe0] sm:$0xf]
    %v81 = vld [vmem:[%s2 + $0xe4] sm:$0xff]
    %v82 = vld [vmem:[%s2 + $0xec] sm:$0xf]
    %v83 = vld [vmem:[%s2 + $0xf0] sm:$0xff]
    %v84 = vld [vmem:[%s2 + $0xf8] sm:$0xf]
    %v85 = vld [vmem:[%s2 + $0xfc] sm:$0xff]
    %v86 = vld [vmem:[%s2 + $0x104] sm:$0xf]
    %v87 = vld [vmem:[%s2 + $0x108] sm:$0xff]
    %v88 = vld [vmem:[%s2 + $0x110] sm:$0xf]
    %v89 = vld [vmem:[%s2 + $0x114] sm:$0xff]
    %v90 = vld [vmem:[%s2 + $0x11c] sm:$0xf]
    %v91 = vld [vmem:[%s2 + $0x120] sm:$0xff]
    %v92 = vld [vmem:[%s2 + $0x128] sm:$0xf]
    %v93 = vld [vmem:[%s2 + $0x12c] sm:$0xff]
    %v94 = vld [vmem:[%s2 + $0x134] sm:$0xf]
    %v95 = vld [vmem:[%s2 + $0x138] sm:$0xff]
    %v96 = vld [vmem:[%s2 + $0x140] sm:$0xf]
    %v97 = vld [vmem:[%s2 + $0x144] sm:$0xff]
    %v98 = vld [vmem:[%s2 + $0x14c] sm:$0xf]
    %v99 = vld [vmem:[%s2 + $0x150] sm:$0xff]
    %v100 = vld [vmem:[%s2 + $0x158] sm:$0xf]
    %v101 = vld [vmem:[%s2 + $0x15c] sm:$0xff]
    %v102 = vld [vmem:[%s2 + $0x164] sm:$0xf]
    %v103 = vld [vmem:[%s2 + $0x168] sm:$0xff]
    %v104 = vld [vmem:[%s2 + $0x170] sm:$0xf]
    %v105 = vld [vmem:[%s2 + $0x174] sm:$0xff]
    %v106 = vld [vmem:[%s2 + $0x17c] sm:$0xf]
    %v107 = vld [vmem:[%s2 + $0x180] sm:$0xff]
    %v108 = vld [vmem:[%s2 + $0x188] sm:$0xf]
    %v109 = vld [vmem:[%s2 + $0x18c] sm:$0xff]
    %v110 = vld [vmem:[%s2 + $0x194] sm:$0xf]
    %v111 = vld [vmem:[%s2 + $0x198] sm:$0xff]
    %v112 = vld [vmem:[%s2 + $0x1a0] sm:$0xf]
    %v113 = vld [vmem:[%s2 + $0x1a4] sm:$0xff]
    %v114 = vld [vmem:[%s2 + $0x1ac] sm:$0xf]
    %v115 = vld [vmem:[%s2 + $0x1b0] sm:$0xff]
    %v116 = vld [vmem:[%s2 + $0x1b8] sm:$0xf]
    %v117 = vld [vmem:[%s2 + $0x1bc] sm:$0xff]
    %v118 = vld [vmem:[%s2 + $0x1c4] sm:$0xf]
    %v119 = vld [vmem:[%s2 + $0x1c8] sm:$0xff]
    %v120 = vld [vmem:[%s2 + $0x1d0] sm:$0xf]
    %v121 = vld [vmem:[%s2 + $0x1d4] sm:$0xff]
    %v122 = vld [vmem:[%s2 + $0x1dc] sm:$0xf]
    %v123 = vld [vmem:[%s2 + $0x1e0] sm:$0xff]
    %v124 = vld [vmem:[%s2 + $0x1e8] sm:$0xf]
    %v125 = vld [vmem:[%s2 + $0x1ec] sm:$0xff]
    %v126 = vld [vmem:[%s2 + $0x1f4] sm:$0xf]
    %v127 = vld [vmem:[%s2 + $0x1f8] sm:$0xff]
    %v128 = vld [vmem:[%s2 + $0x200] sm:$0xf]
    %v129 = vld [vmem:[%s2 + $0x204] sm:$0xff]
    %v130 = vld [vmem:[%s2 + $0x20c] sm:$0xf]
    %v131 = vld [vmem:[%s2 + $0x210] sm:$0xff]
    %v132 = vld [vmem:[%s2 + $0x218] sm:$0xf]
    %v133 = vld [vmem:[%s2 + $0x21c] sm:$0xff]
    %v134 = vld [vmem:[%s2 + $0x224] sm:$0xf]
    %v135 = vld [vmem:[%s2 + $0x228] sm:$0xff]
    %v136 = vld [vmem:[%s2 + $0x230] sm:$0xf]
    %v137 = vld [vmem:[%s2 + $0x234] sm:$0xff]
    %v138 = vld [vmem:[%s2 + $0x23c] sm:$0xf]
    %v139 = vld [vmem:[%s2 + $0x240] sm:$0xff]
    %v140 = vld [vmem:[%s2 + $0x248] sm:$0xf]
    %v141 = vld [vmem:[%s2 + $0x24c] sm:$0xff]
    %v142 = vld [vmem:[%s2 + $0x254] sm:$0xf]
    %v143 = vld [vmem:[%s2 + $0x258] sm:$0xff]
    %v144 = vld [vmem:[%s2 + $0x260] sm:$0xf]
    %v145 = vld [vmem:[%s2 + $0x264] sm:$0xff]
    %v146 = vld [vmem:[%s2 + $0x26c] sm:$0xf]
    %v147 = vld [vmem:[%s2 + $0x270] sm:$0xff]
    %v148 = vld [vmem:[%s2 + $0x278] sm:$0xf]
    %v149 = vld [vmem:[%s2 + $0x27c] sm:$0xff]
    %v150 = vld [vmem:[%s2 + $0x284] sm:$0xf]
    %v151 = vld [vmem:[%s2 + $0x288] sm:$0xff]
    %v152 = vld [vmem:[%s2 + $0x290] sm:$0xf]
    %v153 = vld [vmem:[%s2 + $0x294] sm:$0xff]
    %v154 = vld [vmem:[%s2 + $0x29c] sm:$0xf]
    %v155 = vld [vmem:[%s2 + $0x2a0] sm:$0xff]
    %v156 = vld [vmem:[%s2 + $0x2a8] sm:$0xf]
    %v157 = vld [vmem:[%s2 + $0x2ac] sm:$0xff]
    %v158 = vld [vmem:[%s2 + $0x2b4] sm:$0xf]
    %v159 = vld [vmem:[%s2 + $0x2b8] sm:$0xff]
    %v160 = vld [vmem:[%s2 + $0x2c0] sm:$0xf]
    %v161 = vld [vmem:[%s2 + $0x2c4] sm:$0xff]
    %v162 = vld [vmem:[%s2 + $0x2cc] sm:$0xf]
    %v163 = vld [vmem:[%s2 + $0x2d0] sm:$0xff]
    %v164 = vld [vmem:[%s2 + $0x2d8] sm:$0xf]
    %v165 = vld [vmem:[%s2 + $0x2dc] sm:$0xff]
    %v166 = vld [vmem:[%s2 + $0x2e4] sm:$0xf]
    %v167 = vld [vmem:[%s2 + $0x2e8] sm:$0xff]
    %v168 = vld [vmem:[%s2 + $0x2f0] sm:$0xf]
    %v169 = vld [vmem:[%s2 + $0x2f4] sm:$0xff]
    %v170 = vld [vmem:[%s2 + $0x2fc] sm:$0xf]
    %v171 = vld [vmem:[%s2 + $0x300] sm:$0xff]
    %v172 = vld [vmem:[%s2 + $0x308] sm:$0xf]
    %v173 = vld [vmem:[%s2 + $0x30c] sm:$0xff]
    %v174 = vld [vmem:[%s2 + $0x314] sm:$0xf]
    %v175 = vld [vmem:[%s2 + $0x318] sm:$0xff]
    %v176 = vld [vmem:[%s2 + $0x320] sm:$0xf]
    %v177 = vld [vmem:[%s2 + $0x324] sm:$0xff]
    %v178 = vld [vmem:[%s2 + $0x32c] sm:$0xf]
    %v179 = vld [vmem:[%s2 + $0x330] sm:$0xff]
    %v180 = vld [vmem:[%s2 + $0x338] sm:$0xf]
    %v181 = vld [vmem:[%s2 + $0x33c] sm:$0xff]
    %v182 = vld [vmem:[%s2 + $0x344] sm:$0xf]
    %v183 = vld [vmem:[%s2 + $0x348] sm:$0xff]
    %v184 = vld [vmem:[%s2 + $0x350] sm:$0xf]
    %v185 = vld [vmem:[%s2 + $0x354] sm:$0xff]
    %v186 = vld [vmem:[%s2 + $0x35c] sm:$0xf]
    %v187 = vld [vmem:[%s2 + $0x360] sm:$0xff]
    %v188 = vld [vmem:[%s2 + $0x368] sm:$0xf]
    %v189 = vld [vmem:[%s2 + $0x36c] sm:$0xff]
    %v190 = vld [vmem:[%s2 + $0x374] sm:$0xf]
    %v191 = vld [vmem:[%s2 + $0x378] sm:$0xff]
    %v192 = vld [vmem:[%s2 + $0x380] sm:$0xf]
    %v193 = vld [vmem:[%s2 + $0x384] sm:$0xff]
    %v194 = vld [vmem:[%s2 + $0x38c] sm:$0xf]
    %v195 = vld [vmem:[%s2 + $0x390] sm:$0xff]
    %v196 = vld [vmem:[%s2 + $0x398] sm:$0xf]
    %v197 = vld [vmem:[%s2 + $0x39c] sm:$0xff]
    %v198 = vld [vmem:[%s2 + $0x3a4] sm:$0xf]
    %v199 = vld [vmem:[%s2 + $0x3a8] sm:$0xff]
    %v200 = vld [vmem:[%s2 + $0x3b0] sm:$0xf]
    %v201 = vld [vmem:[%s2 + $0x3b4] sm:$0xff]
    %v202 = vld [vmem:[%s2 + $0x3bc] sm:$0xf]
    %v203 = vld [vmem:[%s2 + $0x3c0] sm:$0xff]
    %v204 = vld [vmem:[%s2 + $0x3c8] sm:$0xf]
    %v205 = vld [vmem:[%s2 + $0x3cc] sm:$0xff]
    %v206 = vld [vmem:[%s2 + $0x3d4] sm:$0xf]
    %v207 = vld [vmem:[%s2 + $0x3d8] sm:$0xff]
    %v208 = vld [vmem:[%s2 + $0x3e0] sm:$0xf]
    %v209 = vld [vmem:[%s2 + $0x3e4] sm:$0xff]
    %v210 = vld [vmem:[%s2 + $0x3ec] sm:$0xf]
    %v211 = vld [vmem:[%s2 + $0x3f0] sm:$0x33]
    %v212 = vld [vmem:[%s2 + $0x3f8] sm:$0x3]
    %v213 = vld [vmem:[%s3] sm:$0x7]
    %v215 = vlaneseq
    %v216 = vshrl.u32 %v215, 7
    %v217 = vsub.s32 0, %v216
    %v218 = vrot.slane %v213, %v217
    %v219 = vlaneseq
    %v220 = vshrl.u32 %v219, 7
    %v221 = vsub.s32 1, %v220
    %v222 = vrot.slane %v213, %v221
    %v223 = vlaneseq
    %v224 = vshrl.u32 %v223, 7
    %v225 = vsub.s32 2, %v224
    %v226 = vrot.slane %v213, %v225
    %v400 = vunpack.c.l.b16 %v43
    %v401 = vunpack.c.h.b16 %v43
    %v402 = vunpack.c.l.b16 %v44
    %v403 = vunpack.c.l.b16 %v45
    %v404 = vunpack.c.h.b16 %v45
    %v405 = vunpack.c.l.b16 %v46
    %v406 = vunpack.c.l.b16 %v47
    %v407 = vunpack.c.h.b16 %v47
    %v408 = vunpack.c.l.b16 %v48
    %v409 = vunpack.c.l.b16 %v49
    %v410 = vunpack.c.h.b16 %v49
    %v411 = vunpack.c.l.b16 %v50
    %v412 = vunpack.c.l.b16 %v51
    %v413 = vunpack.c.h.b16 %v51
    %v414 = vunpack.c.l.b16 %v52
    %v415 = vunpack.c.l.b16 %v53
    %v416 = vunpack.c.h.b16 %v53
    %v417 = vunpack.c.l.b16 %v54
    %v418 = vunpack.c.l.b16 %v55
    %v419 = vunpack.c.h.b16 %v55
    %v420 = vunpack.c.l.b16 %v56
    %v421 = vunpack.c.l.b16 %v57
    %v422 = vunpack.c.h.b16 %v57
    %v423 = vunpack.c.l.b16 %v58
    %v424 = vunpack.c.l.b16 %v59
    %v425 = vunpack.c.h.b16 %v59
    %v426 = vunpack.c.l.b16 %v60
    %v427 = vunpack.c.l.b16 %v61
    %v428 = vunpack.c.h.b16 %v61
    %v429 = vunpack.c.l.b16 %v62
    %v430 = vunpack.c.l.b16 %v63
    %v431 = vunpack.c.h.b16 %v63
    %v432 = vunpack.c.l.b16 %v64
    %v433 = vunpack.c.l.b16 %v65
    %v434 = vunpack.c.h.b16 %v65
    %v435 = vunpack.c.l.b16 %v66
    %v436 = vunpack.c.l.b16 %v67
    %v437 = vunpack.c.h.b16 %v67
    %v438 = vunpack.c.l.b16 %v68
    %v439 = vunpack.c.l.b16 %v69
    %v440 = vunpack.c.h.b16 %v69
    %v441 = vunpack.c.l.b16 %v70
    %v442 = vunpack.c.l.b16 %v71
    %v443 = vunpack.c.h.b16 %v71
    %v444 = vunpack.c.l.b16 %v72
    %v445 = vunpack.c.l.b16 %v73
    %v446 = vunpack.c.h.b16 %v73
    %v447 = vunpack.c.l.b16 %v74
    %v448 = vunpack.c.l.b16 %v75
    %v449 = vunpack.c.h.b16 %v75
    %v450 = vunpack.c.l.b16 %v76
    %v451 = vunpack.c.l.b16 %v77
    %v452 = vunpack.c.h.b16 %v77
    %v453 = vunpack.c.l.b16 %v78
    %v454 = vunpack.c.l.b16 %v79
    %v455 = vunpack.c.h.b16 %v79
    %v456 = vunpack.c.l.b16 %v80
    %v457 = vunpack.c.l.b16 %v81
    %v458 = vunpack.c.h.b16 %v81
    %v459 = vunpack.c.l.b16 %v82
    %v460 = vunpack.c.l.b16 %v83
    %v461 = vunpack.c.h.b16 %v83
    %v462 = vunpack.c.l.b16 %v84
    %v463 = vunpack.c.l.b16 %v85
    %v464 = vunpack.c.h.b16 %v85
    %v465 = vunpack.c.l.b16 %v86
    %v466 = vunpack.c.l.b16 %v87
    %v467 = vunpack.c.h.b16 %v87
    %v468 = vunpack.c.l.b16 %v88
    %v469 = vunpack.c.l.b16 %v89
    %v470 = vunpack.c.h.b16 %v89
    %v471 = vunpack.c.l.b16 %v90
    %v472 = vunpack.c.l.b16 %v91
    %v473 = vunpack.c.h.b16 %v91
    %v474 = vunpack.c.l.b16 %v92
    %v475 = vunpack.c.l.b16 %v93
    %v476 = vunpack.c.h.b16 %v93
    %v477 = vunpack.c.l.b16 %v94
    %v478 = vunpack.c.l.b16 %v95
    %v479 = vunpack.c.h.b16 %v95
    %v480 = vunpack.c.l.b16 %v96
    %v481 = vunpack.c.l.b16 %v97
    %v482 = vunpack.c.h.b16 %v97
    %v483 = vunpack.c.l.b16 %v98
    %v484 = vunpack.c.l.b16 %v99
    %v485 = vunpack.c.h.b16 %v99
    %v486 = vunpack.c.l.b16 %v100
    %v487 = vunpack.c.l.b16 %v101
    %v488 = vunpack.c.h.b16 %v101
    %v489 = vunpack.c.l.b16 %v102
    %v490 = vunpack.c.l.b16 %v103
    %v491 = vunpack.c.h.b16 %v103
    %v492 = vunpack.c.l.b16 %v104
    %v493 = vunpack.c.l.b16 %v105
    %v494 = vunpack.c.h.b16 %v105
    %v495 = vunpack.c.l.b16 %v106
    %v496 = vunpack.c.l.b16 %v107
    %v497 = vunpack.c.h.b16 %v107
    %v498 = vunpack.c.l.b16 %v108
    %v499 = vunpack.c.l.b16 %v109
    %v500 = vunpack.c.h.b16 %v109
    %v501 = vunpack.c.l.b16 %v110
    %v502 = vunpack.c.l.b16 %v111
    %v503 = vunpack.c.h.b16 %v111
    %v504 = vunpack.c.l.b16 %v112
    %v505 = vunpack.c.l.b16 %v113
    %v506 = vunpack.c.h.b16 %v113
    %v507 = vunpack.c.l.b16 %v114
    %v508 = vunpack.c.l.b16 %v115
    %v509 = vunpack.c.h.b16 %v115
    %v510 = vunpack.c.l.b16 %v116
    %v511 = vunpack.c.l.b16 %v117
    %v512 = vunpack.c.h.b16 %v117
    %v513 = vunpack.c.l.b16 %v118
    %v514 = vunpack.c.l.b16 %v119
    %v515 = vunpack.c.h.b16 %v119
    %v516 = vunpack.c.l.b16 %v120
    %v517 = vunpack.c.l.b16 %v121
    %v518 = vunpack.c.h.b16 %v121
    %v519 = vunpack.c.l.b16 %v122
    %v520 = vunpack.c.l.b16 %v123
    %v521 = vunpack.c.h.b16 %v123
    %v522 = vunpack.c.l.b16 %v124
    %v523 = vunpack.c.l.b16 %v125
    %v524 = vunpack.c.h.b16 %v125
    %v525 = vunpack.c.l.b16 %v126
    %v526 = vunpack.c.l.b16 %v127
    %v527 = vunpack.c.h.b16 %v127
    %v528 = vunpack.c.l.b16 %v128
    %v529 = vunpack.c.l.b16 %v129
    %v530 = vunpack.c.h.b16 %v129
    %v531 = vunpack.c.l.b16 %v130
    %v532 = vunpack.c.l.b16 %v131
    %v533 = vunpack.c.h.b16 %v131
    %v534 = vunpack.c.l.b16 %v132
    %v535 = vunpack.c.l.b16 %v133
    %v536 = vunpack.c.h.b16 %v133
    %v537 = vunpack.c.l.b16 %v134
    %v538 = vunpack.c.l.b16 %v135
    %v539 = vunpack.c.h.b16 %v135
    %v540 = vunpack.c.l.b16 %v136
    %v541 = vunpack.c.l.b16 %v137
    %v542 = vunpack.c.h.b16 %v137
    %v543 = vunpack.c.l.b16 %v138
    %v544 = vunpack.c.l.b16 %v139
    %v545 = vunpack.c.h.b16 %v139
    %v546 = vunpack.c.l.b16 %v140
    %v547 = vunpack.c.l.b16 %v141
    %v548 = vunpack.c.h.b16 %v141
    %v549 = vunpack.c.l.b16 %v142
    %v550 = vunpack.c.l.b16 %v143
    %v551 = vunpack.c.h.b16 %v143
    %v552 = vunpack.c.l.b16 %v144
    %v553 = vunpack.c.l.b16 %v145
    %v554 = vunpack.c.h.b16 %v145
    %v555 = vunpack.c.l.b16 %v146
    %v556 = vunpack.c.l.b16 %v147
    %v557 = vunpack.c.h.b16 %v147
    %v558 = vunpack.c.l.b16 %v148
    %v559 = vunpack.c.l.b16 %v149
    %v560 = vunpack.c.h.b16 %v149
    %v561 = vunpack.c.l.b16 %v150
    %v562 = vunpack.c.l.b16 %v151
    %v563 = vunpack.c.h.b16 %v151
    %v564 = vunpack.c.l.b16 %v152
    %v565 = vunpack.c.l.b16 %v153
    %v566 = vunpack.c.h.b16 %v153
    %v567 = vunpack.c.l.b16 %v154
    %v568 = vunpack.c.l.b16 %v155
    %v569 = vunpack.c.h.b16 %v155
    %v570 = vunpack.c.l.b16 %v156
    %v571 = vunpack.c.l.b16 %v157
    %v572 = vunpack.c.h.b16 %v157
    %v573 = vunpack.c.l.b16 %v158
    %v574 = vunpack.c.l.b16 %v159
    %v575 = vunpack.c.h.b16 %v159
    %v576 = vunpack.c.l.b16 %v160
    %v577 = vunpack.c.l.b16 %v161
    %v578 = vunpack.c.h.b16 %v161
    %v579 = vunpack.c.l.b16 %v162
    %v580 = vunpack.c.l.b16 %v163
    %v581 = vunpack.c.h.b16 %v163
    %v582 = vunpack.c.l.b16 %v164
    %v583 = vunpack.c.l.b16 %v165
    %v584 = vunpack.c.h.b16 %v165
    %v585 = vunpack.c.l.b16 %v166
    %v586 = vunpack.c.l.b16 %v167
    %v587 = vunpack.c.h.b16 %v167
    %v588 = vunpack.c.l.b16 %v168
    %v589 = vunpack.c.l.b16 %v169
    %v590 = vunpack.c.h.b16 %v169
    %v591 = vunpack.c.l.b16 %v170
    %v592 = vunpack.c.l.b16 %v171
    %v593 = vunpack.c.h.b16 %v171
    %v594 = vunpack.c.l.b16 %v172
    %v595 = vunpack.c.l.b16 %v173
    %v596 = vunpack.c.h.b16 %v173
    %v597 = vunpack.c.l.b16 %v174
    %v598 = vunpack.c.l.b16 %v175
    %v599 = vunpack.c.h.b16 %v175
    %v600 = vunpack.c.l.b16 %v176
    %v601 = vunpack.c.l.b16 %v177
    %v602 = vunpack.c.h.b16 %v177
    %v603 = vunpack.c.l.b16 %v178
    %v604 = vunpack.c.l.b16 %v179
    %v605 = vunpack.c.h.b16 %v179
    %v606 = vunpack.c.l.b16 %v180
    %v607 = vunpack.c.l.b16 %v181
    %v608 = vunpack.c.h.b16 %v181
    %v609 = vunpack.c.l.b16 %v182
    %v610 = vunpack.c.l.b16 %v183
    %v611 = vunpack.c.h.b16 %v183
    %v612 = vunpack.c.l.b16 %v184
    %v613 = vunpack.c.l.b16 %v185
    %v614 = vunpack.c.h.b16 %v185
    %v615 = vunpack.c.l.b16 %v186
    %v616 = vunpack.c.l.b16 %v187
    %v617 = vunpack.c.h.b16 %v187
    %v618 = vunpack.c.l.b16 %v188
    %v619 = vunpack.c.l.b16 %v189
    %v620 = vunpack.c.h.b16 %v189
    %v621 = vunpack.c.l.b16 %v190
    %v622 = vunpack.c.l.b16 %v191
    %v623 = vunpack.c.h.b16 %v191
    %v624 = vunpack.c.l.b16 %v192
    %v625 = vunpack.c.l.b16 %v193
    %v626 = vunpack.c.h.b16 %v193
    %v627 = vunpack.c.l.b16 %v194
    %v628 = vunpack.c.l.b16 %v195
    %v629 = vunpack.c.h.b16 %v195
    %v630 = vunpack.c.l.b16 %v196
    %v631 = vunpack.c.l.b16 %v197
    %v632 = vunpack.c.h.b16 %v197
    %v633 = vunpack.c.l.b16 %v198
    %v634 = vunpack.c.l.b16 %v199
    %v635 = vunpack.c.h.b16 %v199
    %v636 = vunpack.c.l.b16 %v200
    %v637 = vunpack.c.l.b16 %v201
    %v638 = vunpack.c.h.b16 %v201
    %v639 = vunpack.c.l.b16 %v202
    %v640 = vunpack.c.l.b16 %v203
    %v641 = vunpack.c.h.b16 %v203
    %v642 = vunpack.c.l.b16 %v204
    %v643 = vunpack.c.l.b16 %v205
    %v644 = vunpack.c.h.b16 %v205
    %v645 = vunpack.c.l.b16 %v206
    %v646 = vunpack.c.l.b16 %v207
    %v647 = vunpack.c.h.b16 %v207
    %v648 = vunpack.c.l.b16 %v208
    %v649 = vunpack.c.l.b16 %v209
    %v650 = vunpack.c.h.b16 %v209
    %v651 = vunpack.c.l.b16 %v210
    %v652 = vunpack.c.l.b16 %v211
    %v653 = vunpack.c.h.b16 %v211
    %v654 = vunpack.c.l.b16 %v212
    %v655 = vpack.c.b16 %v403, %v400
    %v656 = vpack.c.b16 %v404, %v401
    %v657 = vpack.c.b16 %v405, %v402
    %v658 = vpack.c.b16 %v409, %v406
    %v659 = vpack.c.b16 %v410, %v407
    %v660 = vpack.c.b16 %v411, %v408
    %v661 = vpack.c.b16 %v415, %v412
    %v662 = vpack.c.b16 %v416, %v413
    %v663 = vpack.c.b16 %v417, %v414
    %v664 = vpack.c.b16 %v421, %v418
    %v665 = vpack.c.b16 %v422, %v419
    %v666 = vpack.c.b16 %v423, %v420
    %v667 = vpack.c.b16 %v427, %v424
    %v668 = vpack.c.b16 %v428, %v425
    %v669 = vpack.c.b16 %v429, %v426
    %v670 = vpack.c.b16 %v433, %v430
    %v671 = vpack.c.b16 %v434, %v431
    %v672 = vpack.c.b16 %v435, %v432
    %v673 = vpack.c.b16 %v439, %v436
    %v674 = vpack.c.b16 %v440, %v437
    %v675 = vpack.c.b16 %v441, %v438
    %v676 = vpack.c.b16 %v445, %v442
    %v677 = vpack.c.b16 %v446, %v443
    %v678 = vpack.c.b16 %v447, %v444
    %v679 = vpack.c.b16 %v451, %v448
    %v680 = vpack.c.b16 %v452, %v449
    %v681 = vpack.c.b16 %v453, %v450
    %v682 = vpack.c.b16 %v457, %v454
    %v683 = vpack.c.b16 %v458, %v455
    %v684 = vpack.c.b16 %v459, %v456
    %v685 = vpack.c.b16 %v463, %v460
    %v686 = vpack.c.b16 %v464, %v461
    %v687 = vpack.c.b16 %v465, %v462
    %v688 = vpack.c.b16 %v469, %v466
    %v689 = vpack.c.b16 %v470, %v467
    %v690 = vpack.c.b16 %v471, %v468
    %v691 = vpack.c.b16 %v475, %v472
    %v692 = vpack.c.b16 %v476, %v473
    %v693 = vpack.c.b16 %v477, %v474
    %v694 = vpack.c.b16 %v481, %v478
    %v695 = vpack.c.b16 %v482, %v479
    %v696 = vpack.c.b16 %v483, %v480
    %v697 = vpack.c.b16 %v487, %v484
    %v698 = vpack.c.b16 %v488, %v485
    %v699 = vpack.c.b16 %v489, %v486
    %v700 = vpack.c.b16 %v493, %v490
    %v701 = vpack.c.b16 %v494, %v491
    %v702 = vpack.c.b16 %v495, %v492
    %v703 = vpack.c.b16 %v499, %v496
    %v704 = vpack.c.b16 %v500, %v497
    %v705 = vpack.c.b16 %v501, %v498
    %v706 = vpack.c.b16 %v505, %v502
    %v707 = vpack.c.b16 %v506, %v503
    %v708 = vpack.c.b16 %v507, %v504
    %v709 = vpack.c.b16 %v511, %v508
    %v710 = vpack.c.b16 %v512, %v509
    %v711 = vpack.c.b16 %v513, %v510
    %v712 = vpack.c.b16 %v517, %v514
    %v713 = vpack.c.b16 %v518, %v515
    %v714 = vpack.c.b16 %v519, %v516
    %v715 = vpack.c.b16 %v523, %v520
    %v716 = vpack.c.b16 %v524, %v521
    %v717 = vpack.c.b16 %v525, %v522
    %v718 = vpack.c.b16 %v529, %v526
    %v719 = vpack.c.b16 %v530, %v527
    %v720 = vpack.c.b16 %v531, %v528
    %v721 = vpack.c.b16 %v535, %v532
    %v722 = vpack.c.b16 %v536, %v533
    %v723 = vpack.c.b16 %v537, %v534
    %v724 = vpack.c.b16 %v541, %v538
    %v725 = vpack.c.b16 %v542, %v539
    %v726 = vpack.c.b16 %v543, %v540
    %v727 = vpack.c.b16 %v547, %v544
    %v728 = vpack.c.b16 %v548, %v545
    %v729 = vpack.c.b16 %v549, %v546
    %v730 = vpack.c.b16 %v553, %v550
    %v731 = vpack.c.b16 %v554, %v551
    %v732 = vpack.c.b16 %v555, %v552
    %v733 = vpack.c.b16 %v559, %v556
    %v734 = vpack.c.b16 %v560, %v557
    %v735 = vpack.c.b16 %v561, %v558
    %v736 = vpack.c.b16 %v565, %v562
    %v737 = vpack.c.b16 %v566, %v563
    %v738 = vpack.c.b16 %v567, %v564
    %v739 = vpack.c.b16 %v571, %v568
    %v740 = vpack.c.b16 %v572, %v569
    %v741 = vpack.c.b16 %v573, %v570
    %v742 = vpack.c.b16 %v577, %v574
    %v743 = vpack.c.b16 %v578, %v575
    %v744 = vpack.c.b16 %v579, %v576
    %v745 = vpack.c.b16 %v583, %v580
    %v746 = vpack.c.b16 %v584, %v581
    %v747 = vpack.c.b16 %v585, %v582
    %v748 = vpack.c.b16 %v589, %v586
    %v749 = vpack.c.b16 %v590, %v587
    %v750 = vpack.c.b16 %v591, %v588
    %v751 = vpack.c.b16 %v595, %v592
    %v752 = vpack.c.b16 %v596, %v593
    %v753 = vpack.c.b16 %v597, %v594
    %v754 = vpack.c.b16 %v601, %v598
    %v755 = vpack.c.b16 %v602, %v599
    %v756 = vpack.c.b16 %v603, %v600
    %v757 = vpack.c.b16 %v607, %v604
    %v758 = vpack.c.b16 %v608, %v605
    %v759 = vpack.c.b16 %v609, %v606
    %v760 = vpack.c.b16 %v613, %v610
    %v761 = vpack.c.b16 %v614, %v611
    %v762 = vpack.c.b16 %v615, %v612
    %v763 = vpack.c.b16 %v619, %v616
    %v764 = vpack.c.b16 %v620, %v617
    %v765 = vpack.c.b16 %v621, %v618
    %v766 = vpack.c.b16 %v625, %v622
    %v767 = vpack.c.b16 %v626, %v623
    %v768 = vpack.c.b16 %v627, %v624
    %v769 = vpack.c.b16 %v631, %v628
    %v770 = vpack.c.b16 %v632, %v629
    %v771 = vpack.c.b16 %v633, %v630
    %v772 = vpack.c.b16 %v637, %v634
    %v773 = vpack.c.b16 %v638, %v635
    %v774 = vpack.c.b16 %v639, %v636
    %v775 = vpack.c.b16 %v643, %v640
    %v776 = vpack.c.b16 %v644, %v641
    %v777 = vpack.c.b16 %v645, %v642
    %v778 = vpack.c.b16 %v649, %v646
    %v779 = vpack.c.b16 %v650, %v647
    %v780 = vpack.c.b16 %v651, %v648
    %v781 = vpack.c.b16 %v652, %v652
    %v782 = vpack.c.b16 %v653, %v653
    %v783 = vpack.c.b16 %v654, %v654
    %vm910 = vcmask 293888
    %v912 = vsel %vm910, %v42, 0
    %vm914 = vcmask 1041408
    %v916 = vsel %vm914, %v781, 0
    %v919 = vsel %vm914, %v782, 0
    %v922 = vsel %vm914, %v783, 0
    %924 = vmatprep.subr.bf16.mxu0 %v656
    %925 = vmatpush1.bf16.msra.mxu0 %v655
    %926 = vmatprep.subr.bf16.mxu0 %v659
    %927 = vmatpush1.bf16.msra.mxu0 %v658
    %928 = vmatprep.subr.bf16.mxu0 %v662
    %929 = vmatpush1.bf16.msra.mxu0 %v661
    %930 = vmatprep.subr.bf16.mxu0 %v665
    %931 = vmatpush1.bf16.msra.mxu0 %v664
    %932 = vmatprep.subr.bf16.mxu0 %v668
    %933 = vmatpush1.bf16.msra.mxu0 %v667
    %934 = vmatprep.subr.bf16.mxu0 %v671
    %935 = vmatpush1.bf16.msra.mxu0 %v670
    %936 = vmatprep.subr.bf16.mxu0 %v674
    %937 = vmatpush1.bf16.msra.mxu0 %v673
    %938 = vmatprep.subr.bf16.mxu0 %v677
    %939 = vmatpush1.bf16.msra.mxu0 %v676
    %940 = vmatprep.subr.bf16.mxu0 %v680
    %941 = vmatpush1.bf16.msra.mxu0 %v679
    %942 = vmatprep.subr.bf16.mxu0 %v683
    %943 = vmatpush1.bf16.msra.mxu0 %v682
    %944 = vmatprep.subr.bf16.mxu0 %v686
    %945 = vmatpush1.bf16.msra.mxu0 %v685
    %946 = vmatprep.subr.bf16.mxu0 %v689
    %947 = vmatpush1.bf16.msra.mxu0 %v688
    %948 = vmatprep.subr.bf16.mxu0 %v692
    %949 = vmatpush1.bf16.msra.mxu0 %v691
    %950 = vmatprep.subr.bf16.mxu0 %v695
    %951 = vmatpush1.bf16.msra.mxu0 %v694
    %952 = vmatprep.subr.bf16.mxu0 %v698
    %953 = vmatpush1.bf16.msra.mxu0 %v697
    %954 = vmatprep.subr.bf16.mxu0 %v701
    %955 = vmatpush1.bf16.msra.mxu0 %v700
    %956 = vmatprep.mubr.bf16.mxu0 %v38
    %957 = vmatmul.mubr.bf16.gmra.mrb[0].mxu0 %v37
    %v958 = vpop.f32.mrb[0].mxu0
    %v959 = vadd.f32 %v218, %v958
    %v960 = vpop.f32.mrb[0].mxu0
    %v961 = vadd.f32 %v222, %v960
    %v962 = vpop.f32.mrb[0].mxu0
    %v963 = vpop.f32.mrb[0].mxu0
    %964 = vdwg.mxu0
    %965 = vmatprep.subr.bf16.mxu0 %v704
    %966 = vmatpush1.bf16.msra.mxu0 %v703
    %967 = vmatprep.subr.bf16.mxu0 %v707
    %968 = vmatpush1.bf16.msra.mxu0 %v706
    %969 = vmatprep.subr.bf16.mxu0 %v710
    %970 = vmatpush1.bf16.msra.mxu0 %v709
    %971 = vmatprep.subr.bf16.mxu0 %v713
    %972 = vmatpush1.bf16.msra.mxu0 %v712
    %973 = vmatprep.subr.bf16.mxu0 %v716
    %974 = vmatpush1.bf16.msra.mxu0 %v715
    %975 = vmatprep.subr.bf16.mxu0 %v719
    %976 = vmatpush1.bf16.msra.mxu0 %v718
    %977 = vmatprep.subr.bf16.mxu0 %v722
    %978 = vmatpush1.bf16.msra.mxu0 %v721
    %979 = vmatprep.subr.bf16.mxu0 %v725
    %980 = vmatpush1.bf16.msra.mxu0 %v724
    %981 = vmatprep.subr.bf16.mxu0 %v728
    %982 = vmatpush1.bf16.msra.mxu0 %v727
    %983 = vmatprep.subr.bf16.mxu0 %v731
    %984 = vmatpush1.bf16.msra.mxu0 %v730
    %985 = vmatprep.subr.bf16.mxu0 %v734
    %986 = vmatpush1.bf16.msra.mxu0 %v733
    %987 = vmatprep.subr.bf16.mxu0 %v737
    %988 = vmatpush1.bf16.msra.mxu0 %v736
    %989 = vmatprep.subr.bf16.mxu0 %v740
    %990 = vmatpush1.bf16.msra.mxu0 %v739
    %991 = vmatprep.subr.bf16.mxu0 %v743
    %992 = vmatpush1.bf16.msra.mxu0 %v742
    %993 = vmatprep.subr.bf16.mxu0 %v746
    %994 = vmatpush1.bf16.msra.mxu0 %v745
    %995 = vmatprep.subr.bf16.mxu0 %v749
    %996 = vmatpush1.bf16.msra.mxu0 %v748
    %997 = vmatprep.mubr.bf16.mxu0 %v40
    %998 = vmatmul.mubr.bf16.gmra.mrb[0].mxu0 %v39
    %v999 = vpop.f32.mrb[0].mxu0
    %v1000 = vadd.f32 %v959, %v999
    %v1001 = vpop.f32.mrb[0].mxu0
    %v1002 = vadd.f32 %v961, %v1001
    %v1003 = vpop.f32.mrb[0].mxu0
    %v1004 = vpop.f32.mrb[0].mxu0
    %1005 = vdwg.mxu0
    %1006 = vmatprep.subr.bf16.mxu0 %v752
    %1007 = vmatpush1.bf16.msra.mxu0 %v751
    %1008 = vmatprep.subr.bf16.mxu0 %v755
    %1009 = vmatpush1.bf16.msra.mxu0 %v754
    %1010 = vmatprep.subr.bf16.mxu0 %v758
    %1011 = vmatpush1.bf16.msra.mxu0 %v757
    %1012 = vmatprep.subr.bf16.mxu0 %v761
    %1013 = vmatpush1.bf16.msra.mxu0 %v760
    %1014 = vmatprep.subr.bf16.mxu0 %v764
    %1015 = vmatpush1.bf16.msra.mxu0 %v763
    %1016 = vmatprep.subr.bf16.mxu0 %v767
    %1017 = vmatpush1.bf16.msra.mxu0 %v766
    %1018 = vmatprep.subr.bf16.mxu0 %v770
    %1019 = vmatpush1.bf16.msra.mxu0 %v769
    %1020 = vmatprep.subr.bf16.mxu0 %v773
    %1021 = vmatpush1.bf16.msra.mxu0 %v772
    %1022 = vmatprep.subr.bf16.mxu0 %v776
    %1023 = vmatpush1.bf16.msra.mxu0 %v775
    %1024 = vmatprep.subr.bf16.mxu0 %v779
    %1025 = vmatpush1.bf16.msra.mxu0 %v778
    %1026 = vmatprep.subr.bf16.mxu0 %v919
    %1027 = vmatpush1.bf16.msra.mxu0 %v916
    %1028 = vmatprep.subr.bf16.mxu0 0
    %1029 = vmatpush1.bf16.msra.mxu0 0
    %1030 = vmatprep.subr.bf16.mxu0 0
    %1031 = vmatpush1.bf16.msra.mxu0 0
    %1032 = vmatprep.subr.bf16.mxu0 0
    %1033 = vmatpush1.bf16.msra.mxu0 0
    %1034 = vmatprep.subr.bf16.mxu0 0
    %1035 = vmatpush1.bf16.msra.mxu0 0
    %1036 = vmatprep.subr.bf16.mxu0 0
    %1037 = vmatpush1.bf16.msra.mxu0 0
    %1038 = vmatprep.mubr.bf16.mxu0 %v912
    %1039 = vmatmul.mubr.bf16.gmra.mrb[0].mxu0 %v41
    %v1040 = vpop.f32.mrb[0].mxu0
    %v1041 = vadd.f32 %v1000, %v1040
    %v1042 = vpop.f32.mrb[0].mxu0
    %v1043 = vadd.f32 %v1002, %v1042
    %v1044 = vpop.f32.mrb[0].mxu0
    %v1045 = vpop.f32.mrb[0].mxu0
    %1046 = vdwg.mxu0
    %1047 = vmatprep.subr.bf16.mxu0 0
    %1048 = vmatpush1.bf16.msra.mxu0 %v657
    %1049 = vmatprep.subr.bf16.mxu0 0
    %1050 = vmatpush1.bf16.msra.mxu0 %v660
    %1051 = vmatprep.subr.bf16.mxu0 0
    %1052 = vmatpush1.bf16.msra.mxu0 %v663
    %1053 = vmatprep.subr.bf16.mxu0 0
    %1054 = vmatpush1.bf16.msra.mxu0 %v666
    %1055 = vmatprep.subr.bf16.mxu0 0
    %1056 = vmatpush1.bf16.msra.mxu0 %v669
    %1057 = vmatprep.subr.bf16.mxu0 0
    %1058 = vmatpush1.bf16.msra.mxu0 %v672
    %1059 = vmatprep.subr.bf16.mxu0 0
    %1060 = vmatpush1.bf16.msra.mxu0 %v675
    %1061 = vmatprep.subr.bf16.mxu0 0
    %1062 = vmatpush1.bf16.msra.mxu0 %v678
    %1063 = vmatprep.subr.bf16.mxu0 0
    %1064 = vmatpush1.bf16.msra.mxu0 %v681
    %1065 = vmatprep.subr.bf16.mxu0 0
    %1066 = vmatpush1.bf16.msra.mxu0 %v684
    %1067 = vmatprep.subr.bf16.mxu0 0
    %1068 = vmatpush1.bf16.msra.mxu0 %v687
    %1069 = vmatprep.subr.bf16.mxu0 0
    %1070 = vmatpush1.bf16.msra.mxu0 %v690
    %1071 = vmatprep.subr.bf16.mxu0 0
    %1072 = vmatpush1.bf16.msra.mxu0 %v693
    %1073 = vmatprep.subr.bf16.mxu0 0
    %1074 = vmatpush1.bf16.msra.mxu0 %v696
    %1075 = vmatprep.subr.bf16.mxu0 0
    %1076 = vmatpush1.bf16.msra.mxu0 %v699
    %1077 = vmatprep.subr.bf16.mxu0 0
    %1078 = vmatpush1.bf16.msra.mxu0 %v702
    %1079 = vmatprep.mubr.bf16.mxu0 %v38
    %1080 = vmatmul.mubr.bf16.gmra.mrb[0].mxu0 %v37
    %v1081 = vpop.f32.mrb[0].mxu0
    %v1082 = vadd.f32 %v226, %v1081
    %v1083 = vpop.f32.mrb[0].mxu0
    %v1084 = vpop.f32.mrb[0].mxu0
    %v1085 = vpop.f32.mrb[0].mxu0
    %1086 = vdwg.mxu0
    %1087 = vmatprep.subr.bf16.mxu0 0
    %1088 = vmatpush1.bf16.msra.mxu0 %v705
    %1089 = vmatprep.subr.bf16.mxu0 0
    %1090 = vmatpush1.bf16.msra.mxu0 %v708
    %1091 = vmatprep.subr.bf16.mxu0 0
    %1092 = vmatpush1.bf16.msra.mxu0 %v711
    %1093 = vmatprep.subr.bf16.mxu0 0
    %1094 = vmatpush1.bf16.msra.mxu0 %v714
    %1095 = vmatprep.subr.bf16.mxu0 0
    %1096 = vmatpush1.bf16.msra.mxu0 %v717
    %1097 = vmatprep.subr.bf16.mxu0 0
    %1098 = vmatpush1.bf16.msra.mxu0 %v720
    %1099 = vmatprep.subr.bf16.mxu0 0
    %1100 = vmatpush1.bf16.msra.mxu0 %v723
    %1101 = vmatprep.subr.bf16.mxu0 0
    %1102 = vmatpush1.bf16.msra.mxu0 %v726
    %1103 = vmatprep.subr.bf16.mxu0 0
    %1104 = vmatpush1.bf16.msra.mxu0 %v729
    %1105 = vmatprep.subr.bf16.mxu0 0
    %1106 = vmatpush1.bf16.msra.mxu0 %v732
    %1107 = vmatprep.subr.bf16.mxu0 0
    %1108 = vmatpush1.bf16.msra.mxu0 %v735
    %1109 = vmatprep.subr.bf16.mxu0 0
    %1110 = vmatpush1.bf16.msra.mxu0 %v738
    %1111 = vmatprep.subr.bf16.mxu0 0
    %1112 = vmatpush1.bf16.msra.mxu0 %v741
    %1113 = vmatprep.subr.bf16.mxu0 0
    %1114 = vmatpush1.bf16.msra.mxu0 %v744
    %1115 = vmatprep.subr.bf16.mxu0 0
    %1116 = vmatpush1.bf16.msra.mxu0 %v747
    %1117 = vmatprep.subr.bf16.mxu0 0
    %1118 = vmatpush1.bf16.msra.mxu0 %v750
    %1119 = vmatprep.mubr.bf16.mxu0 %v40
    %1120 = vmatmul.mubr.bf16.gmra.mrb[0].mxu0 %v39
    %v1121 = vpop.f32.mrb[0].mxu0
    %v1122 = vadd.f32 %v1082, %v1121
    %v1123 = vpop.f32.mrb[0].mxu0
    %v1124 = vpop.f32.mrb[0].mxu0
    %v1125 = vpop.f32.mrb[0].mxu0
    %1126 = vdwg.mxu0
    %1127 = vmatprep.subr.bf16.mxu0 0
    %1128 = vmatpush1.bf16.msra.mxu0 %v753
    %1129 = vmatprep.subr.bf16.mxu0 0
    %1130 = vmatpush1.bf16.msra.mxu0 %v756
    %1131 = vmatprep.subr.bf16.mxu0 0
    %1132 = vmatpush1.bf16.msra.mxu0 %v759
    %1133 = vmatprep.subr.bf16.mxu0 0
    %1134 = vmatpush1.bf16.msra.mxu0 %v762
    %1135 = vmatprep.subr.bf16.mxu0 0
    %1136 = vmatpush1.bf16.msra.mxu0 %v765
    %1137 = vmatprep.subr.bf16.mxu0 0
    %1138 = vmatpush1.bf16.msra.mxu0 %v768
    %1139 = vmatprep.subr.bf16.mxu0 0
    %1140 = vmatpush1.bf16.msra.mxu0 %v771
    %1141 = vmatprep.subr.bf16.mxu0 0
    %1142 = vmatpush1.bf16.msra.mxu0 %v774
    %1143 = vmatprep.subr.bf16.mxu0 0
    %1144 = vmatpush1.bf16.msra.mxu0 %v777
    %1145 = vmatprep.subr.bf16.mxu0 0
    %1146 = vmatpush1.bf16.msra.mxu0 %v780
    %1147 = vmatprep.subr.bf16.mxu0 0
    %1148 = vmatpush1.bf16.msra.mxu0 %v922
    %1149 = vmatprep.subr.bf16.mxu0 0
    %1150 = vmatpush1.bf16.msra.mxu0 0
    %1151 = vmatprep.subr.bf16.mxu0 0
    %1152 = vmatpush1.bf16.msra.mxu0 0
    %1153 = vmatprep.subr.bf16.mxu0 0
    %1154 = vmatpush1.bf16.msra.mxu0 0
    %1155 = vmatprep.subr.bf16.mxu0 0
    %1156 = vmatpush1.bf16.msra.mxu0 0
    %1157 = vmatprep.subr.bf16.mxu0 0
    %1158 = vmatpush1.bf16.msra.mxu0 0
    %1159 = vmatprep.mubr.bf16.mxu0 %v912
    %1160 = vmatmul.mubr.bf16.gmra.mrb[0].mxu0 %v41
    %v1161 = vpop.f32.mrb[0].mxu0
    %v1162 = vadd.f32 %v1122, %v1161
    %v1163 = vpop.f32.mrb[0].mxu0
    %v1164 = vpop.f32.mrb[0].mxu0
    %v1165 = vpop.f32.mrb[0].mxu0
    %1166 = vdwg.mxu0
    %v1167 = vmax.f32 %v1041, 0.0
    %v1168 = vmax.f32 %v1043, 0.0
    %v1169 = vmax.f32 %v1162, 0.0
    %v1170 = vld [vmem:[%s1] sm:$0xff]
    %v1171 = vld [vmem:[%s1 + $0x8] sm:$0xff]
    %v1172 = vld [vmem:[%s1 + $0x10] sm:$0xff]
    %v1173 = vmul.f32 %v1167, %v1170
    %v1174 = vmul.f32 %v1168, %v1171
    %v1175 = vmul.f32 %v1169, %v1172
    %v1176 = vpack.c.bf16 %v1173, %v1173
    %v1177 = vpack.c.bf16 %v1174, %v1174
    %v1178 = vpack.c.bf16 %v1175, %v1175
    %v1179 = vld [vmem:[%s4] sm:$0xf]
    %v1180 = vld [vmem:[%s4 + $0x4] sm:$0xf]
    %v1181 = vld [vmem:[%s4 + $0x8] sm:$0xf]
    %v1182 = vld [vmem:[%s4 + $0xc] sm:$0xf]
    %v1183 = vld [vmem:[%s4 + $0x10] sm:$0xf]
    %v1184 = vld [vmem:[%s4 + $0x14] sm:$0xf]
    %v1185 = vld [vmem:[%s4 + $0x18] sm:$0xf]
    %v1186 = vld [vmem:[%s4 + $0x1c] sm:$0xf]
    %v1187 = vld [vmem:[%s4 + $0x20] sm:$0xf]
    %v1188 = vld [vmem:[%s4 + $0x24] sm:$0xf]
    %v1189 = vld [vmem:[%s4 + $0x28] sm:$0xf]
    %v1190 = vld [vmem:[%s4 + $0x2c] sm:$0xf]
    %v1191 = vld [vmem:[%s4 + $0x30] sm:$0xf]
    %v1192 = vld [vmem:[%s4 + $0x34] sm:$0xf]
    %v1193 = vld [vmem:[%s4 + $0x38] sm:$0xf]
    %v1194 = vld [vmem:[%s4 + $0x3c] sm:$0xf]
    %v1195 = vld [vmem:[%s4 + $0x40] sm:$0xf]
    %v1196 = vld [vmem:[%s4 + $0x44] sm:$0xf]
    %v1197 = vld [vmem:[%s4 + $0x48] sm:$0xf]
    %v1198 = vld [vmem:[%s4 + $0x4c] sm:$0xf]
    %v1199 = vld [vmem:[%s4 + $0x50] sm:$0xf]
    %v1200 = vld [vmem:[%s4 + $0x54] sm:$0xf]
    %v1201 = vld [vmem:[%s4 + $0x58] sm:$0xf]
    %v1202 = vld [vmem:[%s4 + $0x5c] sm:$0xf]
    %v1203 = vld [vmem:[%s4 + $0x60] sm:$0xf]
    %v1204 = vld [vmem:[%s4 + $0x64] sm:$0xf]
    %v1205 = vld [vmem:[%s4 + $0x68] sm:$0xf]
    %v1206 = vld [vmem:[%s4 + $0x6c] sm:$0xf]
    %v1207 = vld [vmem:[%s4 + $0x70] sm:$0xf]
    %v1208 = vld [vmem:[%s4 + $0x74] sm:$0xf]
    %v1209 = vld [vmem:[%s4 + $0x78] sm:$0xf]
    %v1210 = vld [vmem:[%s4 + $0x7c] sm:$0xf]
    %v1211 = vld [vmem:[%s4 + $0x80] sm:$0xf]
    %v1212 = vld [vmem:[%s4 + $0x84] sm:$0xf]
    %v1213 = vld [vmem:[%s4 + $0x88] sm:$0xf]
    %v1214 = vld [vmem:[%s4 + $0x8c] sm:$0xf]
    %v1215 = vld [vmem:[%s4 + $0x90] sm:$0xf]
    %v1216 = vld [vmem:[%s4 + $0x94] sm:$0x3]
    %v1217 = vld [vmem:[%s5] sm:$0x1]
    %v1219 = vlaneseq
    %v1220 = vshrl.u32 %v1219, 7
    %v1221 = vsub.s32 0, %v1220
    %v1222 = vrot.slane %v1217, %v1221
    %v1262 = vunpack.c.l.b16 %v1179
    %v1263 = vunpack.c.l.b16 %v1180
    %v1264 = vunpack.c.l.b16 %v1181
    %v1265 = vunpack.c.l.b16 %v1182
    %v1266 = vunpack.c.l.b16 %v1183
    %v1267 = vunpack.c.l.b16 %v1184
    %v1268 = vunpack.c.l.b16 %v1185
    %v1269 = vunpack.c.l.b16 %v1186
    %v1270 = vunpack.c.l.b16 %v1187
    %v1271 = vunpack.c.l.b16 %v1188
    %v1272 = vunpack.c.l.b16 %v1189
    %v1273 = vunpack.c.l.b16 %v1190
    %v1274 = vunpack.c.l.b16 %v1191
    %v1275 = vunpack.c.l.b16 %v1192
    %v1276 = vunpack.c.l.b16 %v1193
    %v1277 = vunpack.c.l.b16 %v1194
    %v1278 = vunpack.c.l.b16 %v1195
    %v1279 = vunpack.c.l.b16 %v1196
    %v1280 = vunpack.c.l.b16 %v1197
    %v1281 = vunpack.c.l.b16 %v1198
    %v1282 = vunpack.c.l.b16 %v1199
    %v1283 = vunpack.c.l.b16 %v1200
    %v1284 = vunpack.c.l.b16 %v1201
    %v1285 = vunpack.c.l.b16 %v1202
    %v1286 = vunpack.c.l.b16 %v1203
    %v1287 = vunpack.c.l.b16 %v1204
    %v1288 = vunpack.c.l.b16 %v1205
    %v1289 = vunpack.c.l.b16 %v1206
    %v1290 = vunpack.c.l.b16 %v1207
    %v1291 = vunpack.c.l.b16 %v1208
    %v1292 = vunpack.c.l.b16 %v1209
    %v1293 = vunpack.c.l.b16 %v1210
    %v1294 = vunpack.c.l.b16 %v1211
    %v1295 = vunpack.c.l.b16 %v1212
    %v1296 = vunpack.c.l.b16 %v1213
    %v1297 = vunpack.c.l.b16 %v1214
    %v1298 = vunpack.c.l.b16 %v1215
    %v1299 = vunpack.c.l.b16 %v1216
    %v1300 = vpack.c.b16 %v1263, %v1262
    %v1301 = vpack.c.b16 %v1265, %v1264
    %v1302 = vpack.c.b16 %v1267, %v1266
    %v1303 = vpack.c.b16 %v1269, %v1268
    %v1304 = vpack.c.b16 %v1271, %v1270
    %v1305 = vpack.c.b16 %v1273, %v1272
    %v1306 = vpack.c.b16 %v1275, %v1274
    %v1307 = vpack.c.b16 %v1277, %v1276
    %v1308 = vpack.c.b16 %v1279, %v1278
    %v1309 = vpack.c.b16 %v1281, %v1280
    %v1310 = vpack.c.b16 %v1283, %v1282
    %v1311 = vpack.c.b16 %v1285, %v1284
    %v1312 = vpack.c.b16 %v1287, %v1286
    %v1313 = vpack.c.b16 %v1289, %v1288
    %v1314 = vpack.c.b16 %v1291, %v1290
    %v1315 = vpack.c.b16 %v1293, %v1292
    %v1316 = vpack.c.b16 %v1295, %v1294
    %v1317 = vpack.c.b16 %v1297, %v1296
    %v1318 = vpack.c.b16 %v1299, %v1298
    %vm1337 = vcmask 359424
    %v1339 = vsel %vm1337, %v1178, 0
    %vm1341 = vcmask 1045504
    %v1343 = vsel %vm1341, %v1318, 0
    %1345 = vmatprep.subr.bf16.mxu0 0
    %1346 = vmatpush1.bf16.msra.mxu0 %v1300
    %1347 = vmatprep.subr.bf16.mxu0 0
    %1348 = vmatpush1.bf16.msra.mxu0 %v1301
    %1349 = vmatprep.subr.bf16.mxu0 0
    %1350 = vmatpush1.bf16.msra.mxu0 %v1302
    %1351 = vmatprep.subr.bf16.mxu0 0
    %1352 = vmatpush1.bf16.msra.mxu0 %v1303
    %1353 = vmatprep.subr.bf16.mxu0 0
    %1354 = vmatpush1.bf16.msra.mxu0 %v1304
    %1355 = vmatprep.subr.bf16.mxu0 0
    %1356 = vmatpush1.bf16.msra.mxu0 %v1305
    %1357 = vmatprep.subr.bf16.mxu0 0
    %1358 = vmatpush1.bf16.msra.mxu0 %v1306
    %1359 = vmatprep.subr.bf16.mxu0 0
    %1360 = vmatpush1.bf16.msra.mxu0 %v1307
    %1361 = vmatprep.subr.bf16.mxu0 0
    %1362 = vmatpush1.bf16.msra.mxu0 %v1308
    %1363 = vmatprep.subr.bf16.mxu0 0
    %1364 = vmatpush1.bf16.msra.mxu0 %v1309
    %1365 = vmatprep.subr.bf16.mxu0 0
    %1366 = vmatpush1.bf16.msra.mxu0 %v1310
    %1367 = vmatprep.subr.bf16.mxu0 0
    %1368 = vmatpush1.bf16.msra.mxu0 %v1311
    %1369 = vmatprep.subr.bf16.mxu0 0
    %1370 = vmatpush1.bf16.msra.mxu0 %v1312
    %1371 = vmatprep.subr.bf16.mxu0 0
    %1372 = vmatpush1.bf16.msra.mxu0 %v1313
    %1373 = vmatprep.subr.bf16.mxu0 0
    %1374 = vmatpush1.bf16.msra.mxu0 %v1314
    %1375 = vmatprep.subr.bf16.mxu0 0
    %1376 = vmatpush1.bf16.msra.mxu0 %v1315
    %1377 = vmatprep.mubr.bf16.mxu0 %v1177
    %1378 = vmatmul.mubr.bf16.gmra.mrb[0].mxu0 %v1176
    %v1379 = vpop.f32.mrb[0].mxu0
    %v1380 = vadd.f32 %v1222, %v1379
    %v1381 = vpop.f32.mrb[0].mxu0
    %v1382 = vpop.f32.mrb[0].mxu0
    %v1383 = vpop.f32.mrb[0].mxu0
    %1384 = vdwg.mxu0
    %1385 = vmatprep.subr.bf16.mxu0 0
    %1386 = vmatpush1.bf16.msra.mxu0 %v1316
    %1387 = vmatprep.subr.bf16.mxu0 0
    %1388 = vmatpush1.bf16.msra.mxu0 %v1317
    %1389 = vmatprep.subr.bf16.mxu0 0
    %1390 = vmatpush1.bf16.msra.mxu0 %v1343
    %1391 = vmatprep.subr.bf16.mxu0 0
    %1392 = vmatpush1.bf16.msra.mxu0 0
    %1393 = vmatprep.subr.bf16.mxu0 0
    %1394 = vmatpush1.bf16.msra.mxu0 0
    %1395 = vmatprep.subr.bf16.mxu0 0
    %1396 = vmatpush1.bf16.msra.mxu0 0
    %1397 = vmatprep.subr.bf16.mxu0 0
    %1398 = vmatpush1.bf16.msra.mxu0 0
    %1399 = vmatprep.subr.bf16.mxu0 0
    %1400 = vmatpush1.bf16.msra.mxu0 0
    %1401 = vmatprep.subr.bf16.mxu0 0
    %1402 = vmatpush1.bf16.msra.mxu0 0
    %1403 = vmatprep.subr.bf16.mxu0 0
    %1404 = vmatpush1.bf16.msra.mxu0 0
    %1405 = vmatprep.subr.bf16.mxu0 0
    %1406 = vmatpush1.bf16.msra.mxu0 0
    %1407 = vmatprep.subr.bf16.mxu0 0
    %1408 = vmatpush1.bf16.msra.mxu0 0
    %1409 = vmatprep.subr.bf16.mxu0 0
    %1410 = vmatpush1.bf16.msra.mxu0 0
    %1411 = vmatprep.subr.bf16.mxu0 0
    %1412 = vmatpush1.bf16.msra.mxu0 0
    %1413 = vmatprep.subr.bf16.mxu0 0
    %1414 = vmatpush1.bf16.msra.mxu0 0
    %1415 = vmatprep.subr.bf16.mxu0 0
    %1416 = vmatpush1.bf16.msra.mxu0 0
    %1417 = vmatprep.mubr.bf16.mxu0 0
    %1418 = vmatmul.mubr.bf16.gmra.mrb[0].mxu0 %v1339
    %v1419 = vpop.f32.mrb[0].mxu0
    %v1420 = vadd.f32 %v1380, %v1419
    %v1421 = vpop.f32.mrb[0].mxu0
    %v1422 = vpop.f32.mrb[0].mxu0
    %v1423 = vpop.f32.mrb[0].mxu0
    %1424 = vdwg.mxu0
    %v1425 = vmax.f32 %v1420, 0.0
    %v1426 = vpack.c.bf16 %v1425, %v1425
    %v1427 = vld [vmem:[%s6] sm:$0xf]
    %v1428 = vld [vmem:[%s6 + $0x4] sm:$0xf]
    %v1429 = vld [vmem:[%s6 + $0x8] sm:$0xf]
    %v1430 = vld [vmem:[%s6 + $0xc] sm:$0xf]
    %v1431 = vld [vmem:[%s6 + $0x10] sm:$0xf]
    %v1432 = vld [vmem:[%s6 + $0x14] sm:$0xf]
    %v1433 = vld [vmem:[%s6 + $0x18] sm:$0xf]
    %v1434 = vld [vmem:[%s6 + $0x1c] sm:$0xf]
    %v1435 = vld [vmem:[%s6 + $0x20] sm:$0xf]
    %v1436 = vld [vmem:[%s6 + $0x24] sm:$0xf]
    %v1437 = vld [vmem:[%s6 + $0x28] sm:$0xf]
    %v1438 = vld [vmem:[%s6 + $0x2c] sm:$0xf]
    %v1439 = vld [vmem:[%s6 + $0x30] sm:$0x3]
    %v1440 = vld [vmem:[%s7] sm:$0x1]
    %v1442 = vlaneseq
    %v1443 = vshrl.u32 %v1442, 7
    %v1444 = vsub.s32 0, %v1443
    %v1445 = vrot.slane %v1440, %v1444
    %v1460 = vunpack.c.l.b16 %v1427
    %v1461 = vunpack.c.l.b16 %v1428
    %v1462 = vunpack.c.l.b16 %v1429
    %v1463 = vunpack.c.l.b16 %v1430
    %v1464 = vunpack.c.l.b16 %v1431
    %v1465 = vunpack.c.l.b16 %v1432
    %v1466 = vunpack.c.l.b16 %v1433
    %v1467 = vunpack.c.l.b16 %v1434
    %v1468 = vunpack.c.l.b16 %v1435
    %v1469 = vunpack.c.l.b16 %v1436
    %v1470 = vunpack.c.l.b16 %v1437
    %v1471 = vunpack.c.l.b16 %v1438
    %v1472 = vunpack.c.l.b16 %v1439
    %v1473 = vpack.c.b16 %v1461, %v1460
    %v1474 = vpack.c.b16 %v1463, %v1462
    %v1475 = vpack.c.b16 %v1465, %v1464
    %v1476 = vpack.c.b16 %v1467, %v1466
    %v1477 = vpack.c.b16 %v1469, %v1468
    %v1478 = vpack.c.b16 %v1471, %v1470
    %v1479 = vpack.c.b16 %v1472, %v1472
    %vm1486 = vcmask 818176
    %v1488 = vsel %vm1486, %v1426, 0
    %v1491 = vsel %vm914, %v1479, 0
    %1493 = vmatprep.subr.bf16.mxu0 0
    %1494 = vmatpush1.bf16.msra.mxu0 %v1473
    %1495 = vmatprep.subr.bf16.mxu0 0
    %1496 = vmatpush1.bf16.msra.mxu0 %v1474
    %1497 = vmatprep.subr.bf16.mxu0 0
    %1498 = vmatpush1.bf16.msra.mxu0 %v1475
    %1499 = vmatprep.subr.bf16.mxu0 0
    %1500 = vmatpush1.bf16.msra.mxu0 %v1476
    %1501 = vmatprep.subr.bf16.mxu0 0
    %1502 = vmatpush1.bf16.msra.mxu0 %v1477
    %1503 = vmatprep.subr.bf16.mxu0 0
    %1504 = vmatpush1.bf16.msra.mxu0 %v1478
    %1505 = vmatprep.subr.bf16.mxu0 0
    %1506 = vmatpush1.bf16.msra.mxu0 %v1491
    %1507 = vmatprep.subr.bf16.mxu0 0
    %1508 = vmatpush1.bf16.msra.mxu0 0
    %1509 = vmatprep.subr.bf16.mxu0 0
    %1510 = vmatpush1.bf16.msra.mxu0 0
    %1511 = vmatprep.subr.bf16.mxu0 0
    %1512 = vmatpush1.bf16.msra.mxu0 0
    %1513 = vmatprep.subr.bf16.mxu0 0
    %1514 = vmatpush1.bf16.msra.mxu0 0
    %1515 = vmatprep.subr.bf16.mxu0 0
    %1516 = vmatpush1.bf16.msra.mxu0 0
    %1517 = vmatprep.subr.bf16.mxu0 0
    %1518 = vmatpush1.bf16.msra.mxu0 0
    %1519 = vmatprep.subr.bf16.mxu0 0
    %1520 = vmatpush1.bf16.msra.mxu0 0
    %1521 = vmatprep.subr.bf16.mxu0 0
    %1522 = vmatpush1.bf16.msra.mxu0 0
    %1523 = vmatprep.subr.bf16.mxu0 0
    %1524 = vmatpush1.bf16.msra.mxu0 0
    %1525 = vmatprep.mubr.bf16.mxu0 0
    %1526 = vmatmul.mubr.bf16.gmra.mrb[0].mxu0 %v1488
    %v1527 = vpop.f32.mrb[0].mxu0
    %v1528 = vadd.f32 %v1445, %v1527
    %v1529 = vpop.f32.mrb[0].mxu0
    %v1530 = vpop.f32.mrb[0].mxu0
    %v1531 = vpop.f32.mrb[0].mxu0
    %1532 = vdwg.mxu0
    %v1533 = vmax.f32 %v1528, 0.0
    %1534 = vst [vmem:[#allocation2] sm:$0xff] %v1533
    // Predicated region
    $region34: #{tpu_custom_call.1} parent=1 // pred_check
      _
    $region35: #{tpu_custom_call.1} parent=1 // pred_check_branch
      %1536 = sbr.rel (0) target = $region37
    $region36: #{tpu_custom_call.1} parent=1 // pred_region
      %s1538 = ssub.s32 128, 128
      %1539 = vsyncadd [#allocation3], %s1538
      %s1541 = sshll.u32 [#allocation2], 4
      %s1542 = int_to_ptr.vmem [resolvable:$true] %s1541
      %1544 = dma.vmem_to_hbm [thread:$0]  %s1542, 128, %s8, [#allocation3]
    $region37: #{tpu_custom_call.1} parent=1 // pred_fallthru
      _
    // Predicated region
    $region38: #{tpu_custom_call.1} parent=1 // pred_check
      _
    $region39: #{tpu_custom_call.1} parent=1 // pred_check_branch
      %1546 = sbr.rel (0) target = $region41
    $region40: #{tpu_custom_call.1} parent=1 // pred_region
      %1547 = dma.done [#allocation3], 128
    $region41: #{tpu_custom_call.1} parent=1 // pred_fallthru
      _
    %1548 = vsyncpa [#allocation3], 1

</llo_original>
